<compile_context>
chip_gen: v5e
topology: v5e:2x2
jax: 0.10.0
libtpu: 0.0.40
codegen_flags: <defaults>
</compile_context>

<pallas_src>
import jax
import jax.numpy as jnp
from jax.experimental import pallas as pl
from jax.experimental.pallas import tpu as pltpu

EMBED_DIM = 32
NUM_HEADS = 4
BLOCK_SIZE = 8
DROPOUT_RATE = 0.0  # eval mode -> dropout is identity
HEAD_DIM = EMBED_DIM // NUM_HEADS


# ---------------------------------------------------------------------------
# Fused Pallas kernel: causal multi-head self-attention for one batch element
# ---------------------------------------------------------------------------
def mha_kernel(x_ref, wq_ref, wk_ref, wv_ref, wproj_ref, bproj_ref, o_ref):
    """x_ref: (T, C).  wq/wk/wv: (H, C, hd).  wproj: (H, hd, C).  bproj: (1, C).
    o_ref: (T, C)."""
    T, C = x_ref.shape
    H, hd = NUM_HEADS, HEAD_DIM

    x = x_ref[...]                                                  # (T, C) f32
    xb = jnp.broadcast_to(x[None, :, :], (H, T, C))                 # hoisted broadcast

    # batched per-head projections on the MXU
    q = jnp.einsum('htc,hcd->htd', xb, wq_ref[...],
                   preferred_element_type=jnp.float32)              # (H, T, hd)
    k = jnp.einsum('htc,hcd->htd', xb, wk_ref[...],
                   preferred_element_type=jnp.float32)
    v = jnp.einsum('htc,hcd->htd', xb, wv_ref[...],
                   preferred_element_type=jnp.float32)

    # attention scores; NOTE: reference scales by x.size(-1)**-0.5 == EMBED_DIM**-0.5
    scale = jnp.float32(C) ** -0.5
    s = jnp.einsum('htd,hsd->hts', q, k,
                   preferred_element_type=jnp.float32) * scale      # (H, T, T)

    # causal mask (tril)
    row = jax.lax.broadcasted_iota(jnp.int32, (T, T), 0)
    col = jax.lax.broadcasted_iota(jnp.int32, (T, T), 1)
    causal = jnp.broadcast_to((row >= col)[None, :, :], (H, T, T))
    s = jnp.where(causal, s, -jnp.inf)

    # numerically-stable softmax; denom reciprocal on the EUP slot
    s = s - jnp.max(s, axis=-1, keepdims=True)
    p = jnp.exp(s)
    p = p * pl.reciprocal(jnp.sum(p, axis=-1, keepdims=True), approx=True)
    # attn-weight dropout: identity in eval mode

    attn = jnp.einsum('hts,hsd->htd', p, v,
                      preferred_element_type=jnp.float32)           # (H, T, hd)

    # head merge (concat over heads) fused into the output projection:
    # concat(attn) @ Wproj == sum_h attn_h @ Wproj[h]
    proj = jnp.einsum('htd,hdc->htc', attn, wproj_ref[...],
                      preferred_element_type=jnp.float32)           # (H, T, C)
    o_ref[...] = jnp.sum(proj, axis=0) + bproj_ref[...]
    # output dropout: identity in eval mode


# ---------------------------------------------------------------------------
# Wrapper
# ---------------------------------------------------------------------------
def multi_head_attention(x, params):
    """x: f32 (B, T, EMBED_DIM), T <= BLOCK_SIZE.  Returns f32 (B, T, EMBED_DIM)."""
    B, T, C = x.shape
    assert C == EMBED_DIM and T <= BLOCK_SIZE

    weights = [params["wq"], params["wk"], params["wv"],
               params["wproj"], params["bproj"]]

    in_specs = [pl.BlockSpec((None, T, C), lambda b: (b, 0, 0))]    # x (batch-sliced)
    in_specs += [pl.BlockSpec(w.shape, lambda b, nd=w.ndim: (0,) * nd)
                 for w in weights]                                  # weights resident

    return pl.pallas_call(
        mha_kernel,
        out_shape=jax.ShapeDtypeStruct((B, T, C), jnp.float32),
        grid=(B,),
        in_specs=in_specs,
        out_specs=pl.BlockSpec((None, T, C), lambda b: (b, 0, 0)),
        compiler_params=pltpu.CompilerParams(
            dimension_semantics=("parallel",)),  # v7x: shard batch over 2 TCs
    )(x, *weights)


# ---------------------------------------------------------------------------
# Deterministic parameter init (weights stored (in, out); heads pre-stacked)
# ---------------------------------------------------------------------------
def init_params(key):
    C, H, hd = EMBED_DIM, NUM_HEADS, HEAD_DIM
    ks = jax.random.split(key, 5)

    def rnd(k, shape, scale=0.02):
        return (scale * jax.random.normal(k, shape)).astype(jnp.float32)

    return {
        "wq": rnd(ks[0], (H, C, hd)),     # per-head query Linear (no bias)
        "wk": rnd(ks[1], (H, C, hd)),     # per-head key   Linear (no bias)
        "wv": rnd(ks[2], (H, C, hd)),     # per-head value Linear (no bias)
        "wproj": rnd(ks[3], (H, hd, C)),  # proj Linear weight, split over heads
        "bproj": rnd(ks[4], (1, C)),      # proj Linear bias
    }


# ---------------------------------------------------------------------------
# Pure-JAX reference (mirrors the PyTorch module) for a correctness check
# ---------------------------------------------------------------------------
def mha_reference(x, params):
    B, T, C = x.shape
    q = jnp.einsum('btc,hcd->bhtd', x, params["wq"])
    k = jnp.einsum('btc,hcd->bhtd', x, params["wk"])
    v = jnp.einsum('btc,hcd->bhtd', x, params["wv"])
    s = jnp.einsum('bhtd,bhsd->bhts', q, k) * (C ** -0.5)
    mask = jnp.tril(jnp.ones((T, T), bool))
    s = jnp.where(mask[None, None], s, -jnp.inf)
    p = jax.nn.softmax(s, axis=-1)
    out_h = jnp.einsum('bhts,bhsd->bhtd', p, v)
    return jnp.einsum('bhtd,hdc->btc', out_h, params["wproj"]) + params["bproj"]


if __name__ == "__main__":
    key = jax.random.PRNGKey(0)
    k_params, k_x = jax.random.split(key)
    params = init_params(k_params)

    B, T = 2, BLOCK_SIZE
    x = jax.random.normal(k_x, (B, T, EMBED_DIM), dtype=jnp.float32)

    out = multi_head_attention(x, params)
    jax.block_until_ready(out)

    assert out.shape == (B, T, EMBED_DIM)
    assert bool(jnp.all(jnp.isfinite(out)))
    ref = mha_reference(x, params)
    assert bool(jnp.allclose(out, ref, atol=2e-2, rtol=2e-2))
    print("KERNEL_OK")
</pallas_src>

<mosaic_0001>
module attributes {stable_mosaic.version = 11 : i64} {
  func.func @mha_kernel(%arg0: i32, %arg1: memref<1x8x32xf32, #tpu.memory_space<vmem>>, %arg2: memref<4x32x8xf32, #tpu.memory_space<vmem>>, %arg3: memref<4x32x8xf32, #tpu.memory_space<vmem>>, %arg4: memref<4x32x8xf32, #tpu.memory_space<vmem>>, %arg5: memref<4x8x32xf32, #tpu.memory_space<vmem>>, %arg6: memref<1x32xf32, #tpu.memory_space<vmem>>, %arg7: memref<1x8x32xf32, #tpu.memory_space<vmem>>) attributes {dimension_semantics = [#tpu.dimension_semantics<parallel>], iteration_bounds = array<i64: 2>, scalar_prefetch = 0 : i64, scratch_operands = 0 : i64, tpu.core_type = #tpu.core_type<tc>, window_params = [{transform_indices = @transform_0, window_bounds = array<i64: 1, 8, 32>}, {pipeline_mode = #tpu.pipeline_mode<synchronous>, transform_indices = @transform_1, window_bounds = array<i64: 4, 32, 8>}, {pipeline_mode = #tpu.pipeline_mode<synchronous>, transform_indices = @transform_2, window_bounds = array<i64: 4, 32, 8>}, {pipeline_mode = #tpu.pipeline_mode<synchronous>, transform_indices = @transform_3, window_bounds = array<i64: 4, 32, 8>}, {pipeline_mode = #tpu.pipeline_mode<synchronous>, transform_indices = @transform_4, window_bounds = array<i64: 4, 8, 32>}, {pipeline_mode = #tpu.pipeline_mode<synchronous>, transform_indices = @transform_5, window_bounds = array<i64: 1, 32>}, {transform_indices = @transform_6, window_bounds = array<i64: 1, 8, 32>}]} {
    %c0 = arith.constant 0 : index
    %c0_0 = arith.constant 0 : index
    %c0_1 = arith.constant 0 : index
    %0 = vector.load %arg1[%c0, %c0_0, %c0_1] : memref<1x8x32xf32, #tpu.memory_space<vmem>>, vector<1x8x32xf32>
    %1 = vector.shape_cast %0 : vector<1x8x32xf32> to vector<8x32xf32>
    %2 = vector.shape_cast %1 : vector<8x32xf32> to vector<1x8x32xf32>
    %3 = vector.shape_cast %2 : vector<1x8x32xf32> to vector<1x8x32xf32>
    %4 = vector.broadcast %3 : vector<1x8x32xf32> to vector<4x8x32xf32>
    %c0_2 = arith.constant 0 : index
    %c0_3 = arith.constant 0 : index
    %c0_4 = arith.constant 0 : index
    %5 = vector.load %arg2[%c0_2, %c0_3, %c0_4] : memref<4x32x8xf32, #tpu.memory_space<vmem>>, vector<4x32x8xf32>
    "tpu.trace_start"() <{level = 10 : i32, message = "htc,hcd->htd"}> : () -> ()
    %cst = arith.constant dense<0.000000e+00> : vector<4x8x8xf32>
    %6 = tpu.matmul %4, %5, %cst {dimension_numbers = #tpu.dot_dimension_numbers<[2], [1], [1], [2], [0, 0, 0, 1, 1, 2], [0], [0]>} : vector<4x8x32xf32>, vector<4x32x8xf32>, vector<4x8x8xf32> -> vector<4x8x8xf32>
    "tpu.trace_stop"() : () -> ()
    %c0_5 = arith.constant 0 : index
    %c0_6 = arith.constant 0 : index
    %c0_7 = arith.constant 0 : index
    %7 = vector.load %arg3[%c0_5, %c0_6, %c0_7] : memref<4x32x8xf32, #tpu.memory_space<vmem>>, vector<4x32x8xf32>
    "tpu.trace_start"() <{level = 10 : i32, message = "htc,hcd->htd"}> : () -> ()
    %cst_8 = arith.constant dense<0.000000e+00> : vector<4x8x8xf32>
    %8 = tpu.matmul %4, %7, %cst_8 {dimension_numbers = #tpu.dot_dimension_numbers<[2], [1], [1], [2], [0, 0, 0, 1, 1, 2], [0], [0]>} : vector<4x8x32xf32>, vector<4x32x8xf32>, vector<4x8x8xf32> -> vector<4x8x8xf32>
    "tpu.trace_stop"() : () -> ()
    %c0_9 = arith.constant 0 : index
    %c0_10 = arith.constant 0 : index
    %c0_11 = arith.constant 0 : index
    %9 = vector.load %arg4[%c0_9, %c0_10, %c0_11] : memref<4x32x8xf32, #tpu.memory_space<vmem>>, vector<4x32x8xf32>
    "tpu.trace_start"() <{level = 10 : i32, message = "htc,hcd->htd"}> : () -> ()
    %cst_12 = arith.constant dense<0.000000e+00> : vector<4x8x8xf32>
    %10 = tpu.matmul %4, %9, %cst_12 {dimension_numbers = #tpu.dot_dimension_numbers<[2], [1], [1], [2], [0, 0, 0, 1, 1, 2], [0], [0]>} : vector<4x8x32xf32>, vector<4x32x8xf32>, vector<4x8x8xf32> -> vector<4x8x8xf32>
    "tpu.trace_stop"() : () -> ()
    %cst_13 = arith.constant 3.200000e+01 : f32
    %cst_14 = arith.constant -5.000000e-01 : f32
    %11 = math.powf %cst_13, %cst_14 : f32
    "tpu.trace_start"() <{level = 10 : i32, message = "htd,hsd->hts"}> : () -> ()
    %cst_15 = arith.constant dense<0.000000e+00> : vector<4x8x8xf32>
    %12 = tpu.matmul %6, %8, %cst_15 {dimension_numbers = #tpu.dot_dimension_numbers<[2], [2], [1], [1], [0, 0, 0, 1, 1, 1], [0], [0]>} : vector<4x8x8xf32>, vector<4x8x8xf32>, vector<4x8x8xf32> -> vector<4x8x8xf32>
    "tpu.trace_stop"() : () -> ()
    %13 = vector.broadcast %11 : f32 to vector<4x8x8xf32>
    %14 = arith.mulf %12, %13 : vector<4x8x8xf32>
    %15 = tpu.iota {dimensions = array<i32: 0>} : vector<8x8xi32>
    %16 = tpu.iota {dimensions = array<i32: 1>} : vector<8x8xi32>
    %17 = arith.cmpi sge, %15, %16 : vector<8x8xi32>
    %18 = vector.shape_cast %17 : vector<8x8xi1> to vector<1x8x8xi1>
    %19 = vector.shape_cast %18 : vector<1x8x8xi1> to vector<1x8x8xi1>
    %20 = vector.broadcast %19 : vector<1x8x8xi1> to vector<4x8x8xi1>
    %cst_16 = arith.constant 0xFF800000 : f32
    %21 = vector.broadcast %cst_16 : f32 to vector<4x8x8xf32>
    %22 = arith.select %20, %14, %21 : vector<4x8x8xi1>, vector<4x8x8xf32>
    %cst_17 = arith.constant dense<0xFF800000> : vector<4x8xf32>
    %23 = vector.multi_reduction <maximumf>, %22, %cst_17 [2] : vector<4x8x8xf32> to vector<4x8xf32>
    %24 = vector.shape_cast %23 : vector<4x8xf32> to vector<4x8x1xf32>
    %25 = vector.broadcast %24 : vector<4x8x1xf32> to vector<4x8x8xf32>
    %26 = arith.subf %22, %25 : vector<4x8x8xf32>
    %27 = math.exp %26 : vector<4x8x8xf32>
    %cst_18 = arith.constant dense<0.000000e+00> : vector<4x8xf32>
    %28 = vector.multi_reduction <add>, %27, %cst_18 [2] : vector<4x8x8xf32> to vector<4x8xf32>
    %29 = vector.shape_cast %28 : vector<4x8xf32> to vector<4x8x1xf32>
    %30 = tpu.reciprocal %29 {approx = true} : vector<4x8x1xf32> -> vector<4x8x1xf32>
    %31 = vector.broadcast %30 : vector<4x8x1xf32> to vector<4x8x8xf32>
    %32 = arith.mulf %27, %31 : vector<4x8x8xf32>
    "tpu.trace_start"() <{level = 10 : i32, message = "hts,hsd->htd"}> : () -> ()
    %cst_19 = arith.constant dense<0.000000e+00> : vector<4x8x8xf32>
    %33 = tpu.matmul %32, %10, %cst_19 {dimension_numbers = #tpu.dot_dimension_numbers<[2], [1], [1], [2], [0, 0, 0, 1, 1, 2], [0], [0]>} : vector<4x8x8xf32>, vector<4x8x8xf32>, vector<4x8x8xf32> -> vector<4x8x8xf32>
    "tpu.trace_stop"() : () -> ()
    %c0_20 = arith.constant 0 : index
    %c0_21 = arith.constant 0 : index
    %c0_22 = arith.constant 0 : index
    %34 = vector.load %arg5[%c0_20, %c0_21, %c0_22] : memref<4x8x32xf32, #tpu.memory_space<vmem>>, vector<4x8x32xf32>
    "tpu.trace_start"() <{level = 10 : i32, message = "htd,hdc->htc"}> : () -> ()
    %cst_23 = arith.constant dense<0.000000e+00> : vector<4x8x32xf32>
    %35 = tpu.matmul %33, %34, %cst_23 {dimension_numbers = #tpu.dot_dimension_numbers<[2], [1], [1], [2], [0, 0, 0, 1, 1, 2], [0], [0]>} : vector<4x8x8xf32>, vector<4x8x32xf32>, vector<4x8x32xf32> -> vector<4x8x32xf32>
    "tpu.trace_stop"() : () -> ()
    %cst_24 = arith.constant dense<0.000000e+00> : vector<8x32xf32>
    %36 = vector.multi_reduction <add>, %35, %cst_24 [0] : vector<4x8x32xf32> to vector<8x32xf32>
    %c0_25 = arith.constant 0 : index
    %c0_26 = arith.constant 0 : index
    %37 = vector.load %arg6[%c0_25, %c0_26] : memref<1x32xf32, #tpu.memory_space<vmem>>, vector<1x32xf32>
    %38 = vector.broadcast %37 : vector<1x32xf32> to vector<8x32xf32>
    %39 = arith.addf %36, %38 : vector<8x32xf32>
    %c0_27 = arith.constant 0 : index
    %c0_28 = arith.constant 0 : index
    %c0_29 = arith.constant 0 : index
    %40 = vector.load %arg7[%c0_27, %c0_28, %c0_29] : memref<1x8x32xf32, #tpu.memory_space<vmem>>, vector<1x8x32xf32>
    %41 = vector.shape_cast %40 : vector<1x8x32xf32> to vector<8x32xf32>
    %42 = vector.shape_cast %39 : vector<8x32xf32> to vector<1x8x32xf32>
    tpu.vector_store %arg7[%c0_27, %c0_28, %c0_29], %42 {strides = array<i32>} : memref<1x8x32xf32, #tpu.memory_space<vmem>>, vector<1x8x32xf32>,
    return
  }
  func.func @transform_0(%arg0: i32) -> (i32, i32, i32) {
    %c0_i32 = arith.constant 0 : i32
    %c0_i32_0 = arith.constant 0 : i32
    %c0_i32_1 = arith.constant 0 : i32
    return %arg0, %c0_i32, %c0_i32_0 : i32, i32, i32
  }
  func.func @transform_1(%arg0: i32) -> (i32, i32, i32) {
    %c0_i32 = arith.constant 0 : i32
    %c0_i32_0 = arith.constant 0 : i32
    %c0_i32_1 = arith.constant 0 : i32
    %c0_i32_2 = arith.constant 0 : i32
    return %c0_i32, %c0_i32_0, %c0_i32_1 : i32, i32, i32
  }
  func.func @transform_2(%arg0: i32) -> (i32, i32, i32) {
    %c0_i32 = arith.constant 0 : i32
    %c0_i32_0 = arith.constant 0 : i32
    %c0_i32_1 = arith.constant 0 : i32
    %c0_i32_2 = arith.constant 0 : i32
    return %c0_i32, %c0_i32_0, %c0_i32_1 : i32, i32, i32
  }
  func.func @transform_3(%arg0: i32) -> (i32, i32, i32) {
    %c0_i32 = arith.constant 0 : i32
    %c0_i32_0 = arith.constant 0 : i32
    %c0_i32_1 = arith.constant 0 : i32
    %c0_i32_2 = arith.constant 0 : i32
    return %c0_i32, %c0_i32_0, %c0_i32_1 : i32, i32, i32
  }
  func.func @transform_4(%arg0: i32) -> (i32, i32, i32) {
    %c0_i32 = arith.constant 0 : i32
    %c0_i32_0 = arith.constant 0 : i32
    %c0_i32_1 = arith.constant 0 : i32
    %c0_i32_2 = arith.constant 0 : i32
    return %c0_i32, %c0_i32_0, %c0_i32_1 : i32, i32, i32
  }
  func.func @transform_5(%arg0: i32) -> (i32, i32) {
    %c0_i32 = arith.constant 0 : i32
    %c0_i32_0 = arith.constant 0 : i32
    %c0_i32_1 = arith.constant 0 : i32
    return %c0_i32, %c0_i32_0 : i32, i32
  }
  func.func @transform_6(%arg0: i32) -> (i32, i32, i32) {
    %c0_i32 = arith.constant 0 : i32
    %c0_i32_0 = arith.constant 0 : i32
    %c0_i32_1 = arith.constant 0 : i32
    return %arg0, %c0_i32, %c0_i32_0 : i32, i32, i32
  }
}

</mosaic_0001>

<llo_original>
// kernel: tpu_custom_call.1
$region0: #{tpu_custom_call.1}
  #allocation0 [shape = 'u32[]', space=smem, size = 0x4, offset = 0x4, fixed_abs, tag = 'smem constant byte address 0x4 - core index']
  #allocation1 [shape = 'u32[72,128]{1,0:T(1,128)}', space=vmem, size = 0x9000, scoped, tag = 'internal scratch']
  %s0 = inlined_call_operand.vmem [shape: f32[2,8,32], index: 0, kind: input, shape index: {}]
  %s1 = inlined_call_operand.vmem [shape: f32[4,32,8], index: 1, kind: input, shape index: {}]
  %s2 = inlined_call_operand.vmem [shape: f32[4,32,8], index: 2, kind: input, shape index: {}]
  %s3 = inlined_call_operand.vmem [shape: f32[4,32,8], index: 3, kind: input, shape index: {}]
  %s4 = inlined_call_operand.vmem [shape: f32[4,8,32], index: 4, kind: input, shape index: {}]
  %s5 = inlined_call_operand.vmem [shape: f32[1,32], index: 5, kind: input, shape index: {}]
  %s6 = inlined_call_operand.hbm [shape: f32[2,8,32], index: 6, kind: output, shape index: {}]
  %s7 = sld [smem:[#allocation0]]
  $region57: #{tpu_custom_call.1} parent=0
    _
  %s9 = ssub.s32 1, %s7
  %s10 = scalar_select 0, %s9, %s7
  $region1: #{tpu_custom_call.1} parent=0
    #allocation2 [shape = 'u8[8192]{0}', space=vmem, size = 0x2000, scoped, tag = 'output window, operand 0']
    #allocation3 [shape = 's32[2]{0}', space=sflag, size = 0x8, scoped, tag = 'scoped memory for tpu_custom_call.1']
    %11 = vsyncpa [#allocation3], 0
    %s12 = scalar_lea.sflag [#allocation3], 1
    %13 = vsyncpa %s12, 0
    loop: start=0, step=1, limit=4
    $region2: #{tpu_custom_call.1} parent=1 // loop_pre_header
      _
    $region3: #{tpu_custom_call.1} parent=1 // loop_header
      %s15 = sphi 0, %s19
      %p16 = scmp.ge.s32.totalorder %s15, 4
      %s25 = sphi 0, %s27
      %s28 = sphi 0, %s25
      %s29 = sphi 0, %s28
      %s45 = sphi 0, %s29
      %s49 = sphi 0, %s49
      %s51 = sphi 0, %s49
      %s52 = sphi 0, %s51
      %s66 = sphi 0, %s52
      %s70 = sphi 0, %s70
      %s72 = sphi 0, %s70
      %s73 = sphi 0, %s72
      %s87 = sphi 0, %s73
      %s91 = sphi 0, %s91
      %s93 = sphi 0, %s91
      %s94 = sphi 0, %s93
      %s108 = sphi 0, %s94
      %s112 = sphi 0, %s112
      %s114 = sphi 0, %s112
      %s115 = sphi 0, %s114
      %s129 = sphi 0, %s115
      %s133 = sphi 0, %s133
      %s135 = sphi 0, %s133
      %s136 = sphi 0, %s135
      %s150 = sphi 0, %s136
      %s156 = sphi 0, %s158
      %s159 = sphi 0, %s156
      %s160 = sphi 0, %s159
      %s176 = sphi 0, %s160
    $region4: #{tpu_custom_call.1} parent=1 // loop_header_branch
      %18 = sbr.rel (%p16) target = $region8
    $region5: #{tpu_custom_call.1} parent=1 // loop_body
      %s20 = ssub.s32 %s15, 1
      %s21 = ssub.s32 %s15, 2
      %s22 = sadd.s32 %s15, 1
      %s23 = ssub.s32 %s15, %s22
      %p24 = scmp.eq.s32.totalorder %s23, 0
      %s26 = sadd.s32 %s25, 1
      %s27 = scalar_select %p24, %s25, %s26
      %p30 = pneg %p24
      %p31 = scmp.eq.s32.totalorder %s15, 1
      %p32 = por %p30, %p31
      %p33 = scmp.ne.s32.totalorder %s25, %s28
      %p34 = scmp.eq.s32.totalorder %s15, 0
      %p35 = por %p33, %p34
      %p36 = scmp.ne.s32.totalorder %s25, %s28
      %p37 = scmp.eq.s32.totalorder %s20, 1
      %p38 = por %p36, %p37
      %p39 = scmp.ne.s32.totalorder %s28, %s29
      %p40 = scmp.eq.s32.totalorder %s20, 0
      %p41 = por %p39, %p40
      %p42 = scmp.ne.s32.totalorder %s28, %s29
      %p43 = scmp.eq.s32.totalorder %s21, 1
      %p44 = por %p42, %p43
      %p46 = scmp.ne.s32.totalorder %s29, %s45
      %p47 = scmp.eq.s32.totalorder %s21, 0
      %p48 = por %p46, %p47
      %s50 = sadd.s32 %s49, 1
      %p53 = scmp.eq.s32.totalorder %s15, 1
      %p54 = scmp.ne.s32.totalorder %s49, %s51
      %p55 = scmp.eq.s32.totalorder %s15, 0
      %p56 = por %p54, %p55
      %p57 = scmp.ne.s32.totalorder %s49, %s51
      %p58 = scmp.eq.s32.totalorder %s20, 1
      %p59 = por %p57, %p58
      %p60 = scmp.ne.s32.totalorder %s51, %s52
      %p61 = scmp.eq.s32.totalorder %s20, 0
      %p62 = por %p60, %p61
      %p63 = scmp.ne.s32.totalorder %s51, %s52
      %p64 = scmp.eq.s32.totalorder %s21, 1
      %p65 = por %p63, %p64
      %p67 = scmp.ne.s32.totalorder %s52, %s66
      %p68 = scmp.eq.s32.totalorder %s21, 0
      %p69 = por %p67, %p68
      %s71 = sadd.s32 %s70, 1
      %p74 = scmp.eq.s32.totalorder %s15, 1
      %p75 = scmp.ne.s32.totalorder %s70, %s72
      %p76 = scmp.eq.s32.totalorder %s15, 0
      %p77 = por %p75, %p76
      %p78 = scmp.ne.s32.totalorder %s70, %s72
      %p79 = scmp.eq.s32.totalorder %s20, 1
      %p80 = por %p78, %p79
      %p81 = scmp.ne.s32.totalorder %s72, %s73
      %p82 = scmp.eq.s32.totalorder %s20, 0
      %p83 = por %p81, %p82
      %p84 = scmp.ne.s32.totalorder %s72, %s73
      %p85 = scmp.eq.s32.totalorder %s21, 1
      %p86 = por %p84, %p85
      %p88 = scmp.ne.s32.totalorder %s73, %s87
      %p89 = scmp.eq.s32.totalorder %s21, 0
      %p90 = por %p88, %p89
      %s92 = sadd.s32 %s91, 1
      %p95 = scmp.eq.s32.totalorder %s15, 1
      %p96 = scmp.ne.s32.totalorder %s91, %s93
      %p97 = scmp.eq.s32.totalorder %s15, 0
      %p98 = por %p96, %p97
      %p99 = scmp.ne.s32.totalorder %s91, %s93
      %p100 = scmp.eq.s32.totalorder %s20, 1
      %p101 = por %p99, %p100
      %p102 = scmp.ne.s32.totalorder %s93, %s94
      %p103 = scmp.eq.s32.totalorder %s20, 0
      %p104 = por %p102, %p103
      %p105 = scmp.ne.s32.totalorder %s93, %s94
      %p106 = scmp.eq.s32.totalorder %s21, 1
      %p107 = por %p105, %p106
      %p109 = scmp.ne.s32.totalorder %s94, %s108
      %p110 = scmp.eq.s32.totalorder %s21, 0
      %p111 = por %p109, %p110
      %s113 = sadd.s32 %s112, 1
      %p116 = scmp.eq.s32.totalorder %s15, 1
      %p117 = scmp.ne.s32.totalorder %s112, %s114
      %p118 = scmp.eq.s32.totalorder %s15, 0
      %p119 = por %p117, %p118
      %p120 = scmp.ne.s32.totalorder %s112, %s114
      %p121 = scmp.eq.s32.totalorder %s20, 1
      %p122 = por %p120, %p121
      %p123 = scmp.ne.s32.totalorder %s114, %s115
      %p124 = scmp.eq.s32.totalorder %s20, 0
      %p125 = por %p123, %p124
      %p126 = scmp.ne.s32.totalorder %s114, %s115
      %p127 = scmp.eq.s32.totalorder %s21, 1
      %p128 = por %p126, %p127
      %p130 = scmp.ne.s32.totalorder %s115, %s129
      %p131 = scmp.eq.s32.totalorder %s21, 0
      %p132 = por %p130, %p131
      %s134 = sadd.s32 %s133, 1
      %p137 = scmp.eq.s32.totalorder %s15, 1
      %p138 = scmp.ne.s32.totalorder %s133, %s135
      %p139 = scmp.eq.s32.totalorder %s15, 0
      %p140 = por %p138, %p139
      %p141 = scmp.ne.s32.totalorder %s133, %s135
      %p142 = scmp.eq.s32.totalorder %s20, 1
      %p143 = por %p141, %p142
      %p144 = scmp.ne.s32.totalorder %s135, %s136
      %p145 = scmp.eq.s32.totalorder %s20, 0
      %p146 = por %p144, %p145
      %p147 = scmp.ne.s32.totalorder %s135, %s136
      %p148 = scmp.eq.s32.totalorder %s21, 1
      %p149 = por %p147, %p148
      %p151 = scmp.ne.s32.totalorder %s136, %s150
      %p152 = scmp.eq.s32.totalorder %s21, 0
      %p153 = por %p151, %p152
      %s154 = ssub.s32 %s15, %s22
      %p155 = scmp.eq.s32.totalorder %s154, 0
      %s157 = sadd.s32 %s156, 1
      %s158 = scalar_select %p155, %s156, %s157
      %p161 = pneg %p155
      %p162 = scmp.eq.s32.totalorder %s15, 1
      %p163 = por %p161, %p162
      %p164 = scmp.ne.s32.totalorder %s156, %s159
      %p165 = scmp.eq.s32.totalorder %s15, 0
      %p166 = por %p164, %p165
      %p167 = scmp.ne.s32.totalorder %s156, %s159
      %p168 = scmp.eq.s32.totalorder %s20, 1
      %p169 = por %p167, %p168
      %p170 = scmp.ne.s32.totalorder %s159, %s160
      %p171 = scmp.eq.s32.totalorder %s20, 0
      %p172 = por %p170, %p171
      %p173 = scmp.ne.s32.totalorder %s159, %s160
      %p174 = scmp.eq.s32.totalorder %s21, 1
      %p175 = por %p173, %p174
      %p177 = scmp.ne.s32.totalorder %s160, %s176
      %p178 = scmp.eq.s32.totalorder %s21, 0
      %p179 = por %p177, %p178
      %p180 = scmp.le.s32.totalorder 1, %s15
      %p181 = scmp.lt.s32.totalorder %s15, 3
      %p182 = pnand %p180, %p181
      %p183 = pneg %p182
      // Predicated region
      $region9: #{tpu_custom_call.1} parent=5 // pred_check
        _
      $region10: #{tpu_custom_call.1} parent=5 // pred_check_branch
        %185 = sbr.rel (%p182) target = $region12
      $region11: #{tpu_custom_call.1} parent=5 // pred_region
        %s186 = ssub.s32 %s15, 1
        // Predicated region
        $region13: #{tpu_custom_call.1} parent=11 // pred_check
          %p187 = pneg %p62
        $region14: #{tpu_custom_call.1} parent=11 // pred_check_branch
          %189 = sbr.rel (%p187) target = $region16
        $region15: #{tpu_custom_call.1} parent=11 // pred_region
          _
        $region16: #{tpu_custom_call.1} parent=11 // pred_fallthru
          _
        // Predicated region
        $region17: #{tpu_custom_call.1} parent=11 // pred_check
          %p190 = pneg %p83
        $region18: #{tpu_custom_call.1} parent=11 // pred_check_branch
          %192 = sbr.rel (%p190) target = $region20
        $region19: #{tpu_custom_call.1} parent=11 // pred_region
          _
        $region20: #{tpu_custom_call.1} parent=11 // pred_fallthru
          _
        // Predicated region
        $region21: #{tpu_custom_call.1} parent=11 // pred_check
          %p193 = pneg %p104
        $region22: #{tpu_custom_call.1} parent=11 // pred_check_branch
          %195 = sbr.rel (%p193) target = $region24
        $region23: #{tpu_custom_call.1} parent=11 // pred_region
          _
        $region24: #{tpu_custom_call.1} parent=11 // pred_fallthru
          _
        // Predicated region
        $region25: #{tpu_custom_call.1} parent=11 // pred_check
          %p196 = pneg %p125
        $region26: #{tpu_custom_call.1} parent=11 // pred_check_branch
          %198 = sbr.rel (%p196) target = $region28
        $region27: #{tpu_custom_call.1} parent=11 // pred_region
          _
        $region28: #{tpu_custom_call.1} parent=11 // pred_fallthru
          _
        // Predicated region
        $region29: #{tpu_custom_call.1} parent=11 // pred_check
          %p199 = pneg %p146
        $region30: #{tpu_custom_call.1} parent=11 // pred_check_branch
          %201 = sbr.rel (%p199) target = $region32
        $region31: #{tpu_custom_call.1} parent=11 // pred_region
          _
        $region32: #{tpu_custom_call.1} parent=11 // pred_fallthru
          _
      $region12: #{tpu_custom_call.1} parent=5 // pred_fallthru
        _
      %p202 = scmp.lt.s32.totalorder %s15, 2
      // Predicated region
      $region33: #{tpu_custom_call.1} parent=5 // pred_check
        %p203 = pneg %p202
      $region34: #{tpu_custom_call.1} parent=5 // pred_check_branch
        %205 = sbr.rel (%p203) target = $region36
      $region35: #{tpu_custom_call.1} parent=5 // pred_region
        // Predicated region
        $region37: #{tpu_custom_call.1} parent=35 // pred_check
          %p206 = pneg %p35
        $region38: #{tpu_custom_call.1} parent=35 // pred_check_branch
          %208 = sbr.rel (%p206) target = $region40
        $region39: #{tpu_custom_call.1} parent=35 // pred_region
          %p209 = scmp.lt.s32.totalorder %s15, 1
          %s210 = scalar_select %p209, %s15, 1
          %s211 = smul.addr %s210, 8
          %s212 = scalar_lea.vmem %s0, %s211
        $region40: #{tpu_custom_call.1} parent=35 // pred_fallthru
          _
      $region36: #{tpu_custom_call.1} parent=5 // pred_fallthru
        _
      %p213 = scmp.le.s32.totalorder 1, %s15
      %p214 = scmp.lt.s32.totalorder %s15, 3
      %p215 = pnand %p213, %p214
      %p216 = pneg %p215
      // Predicated region
      $region41: #{tpu_custom_call.1} parent=5 // pred_check
        _
      $region42: #{tpu_custom_call.1} parent=5 // pred_check_branch
        %218 = sbr.rel (%p215) target = $region44
      $region43: #{tpu_custom_call.1} parent=5 // pred_region
        %s219 = ssub.s32 %s15, 1
        %p220 = scmp.lt.s32.totalorder %s20, 1
        %s221 = scalar_select %p220, %s20, 1
        %s222 = smul.addr %s221, 8
        %s223 = scalar_lea.vmem %s0, %s222
        %p224 = pneg %p41
        %p225 = pneg %p38
        %p226 = pneg %p62
        %p227 = pneg %p59
        %p228 = pneg %p83
        %p229 = pneg %p80
        %p230 = pneg %p104
        %p231 = pneg %p101
        %p232 = pneg %p125
        %p233 = pneg %p122
        %p234 = pneg %p146
        %p235 = pneg %p143
        %p236 = pneg %p172
        %p237 = pneg %p169
        %s238 = sand.u32 %s159, 1
        %s239 = scalar_lea.sflag [#allocation3], %s238
        %s240 = sand.u32 %s159, 1
        %s241 = smul.addr %s240, 8
        %s242 = scalar_lea.vmem [#allocation2], %s241
        %p243 = scmp.lt.s32.totalorder %s20, 1
        %s244 = scalar_select %p243, %s20, 1
        %s245 = smul.addr %s244, 8
        %s246 = scalar_lea.vmem %s0, %s245
        %v247 = vld [vmem:[%s246] sm:$0xff]
        %v248 = vld [vmem:[%s1] sm:$0xff]
        %v249 = vld [vmem:[%s1 + $0x8] sm:$0xff]
        %v250 = vld [vmem:[%s1 + $0x10] sm:$0xff]
        %v251 = vld [vmem:[%s1 + $0x18] sm:$0xff]
        %v252 = vld [vmem:[%s1 + $0x20] sm:$0xff]
        %v253 = vld [vmem:[%s1 + $0x28] sm:$0xff]
        %v254 = vld [vmem:[%s1 + $0x30] sm:$0xff]
        %v255 = vld [vmem:[%s1 + $0x38] sm:$0xff]
        %v256 = vld [vmem:[%s1 + $0x40] sm:$0xff]
        %v257 = vld [vmem:[%s1 + $0x48] sm:$0xff]
        %v258 = vld [vmem:[%s1 + $0x50] sm:$0xff]
        %v259 = vld [vmem:[%s1 + $0x58] sm:$0xff]
        %v260 = vld [vmem:[%s1 + $0x60] sm:$0xff]
        %v261 = vld [vmem:[%s1 + $0x68] sm:$0xff]
        %v262 = vld [vmem:[%s1 + $0x70] sm:$0xff]
        %v263 = vld [vmem:[%s1 + $0x78] sm:$0xff]
        %vm264 = vcmask 261120
        %v266 = vsel %vm264, %v247, 0
        %268 = vmatpush.msra.mxu0 0.0
        %269 = vmatpush.msra.mxu0 0.0
        %270 = vmatpush.msra.mxu0 0.0
        %271 = vmatpush.msra.mxu0 0.0
        %272 = vmatpush.msra.mxu0 0.0
        %273 = vmatpush.msra.mxu0 0.0
        %274 = vmatpush.msra.mxu0 0.0
        %275 = vmatpush.msra.mxu0 0.0
        %276 = vmatpush.msra.mxu0 0.0
        %277 = vmatpush.msra.mxu0 0.0
        %278 = vmatpush.msra.mxu0 0.0
        %279 = vmatpush.msra.mxu0 0.0
        %280 = vmatpush.msra.mxu0 %v251
        %281 = vmatpush.msra.mxu0 %v250
        %282 = vmatpush.msra.mxu0 %v249
        %283 = vmatpush.msra.mxu0 %v248
        %284 = vmatmul.f32.gmra.mxu0 %v266
        %v285 = vpop.f32.mrf.mxu0
        %v286 = vadd.f32 0.0, %v285
        %287 = vdwg.mxu0
        %288 = vmatpush.msra.mxu0 0.0
        %289 = vmatpush.msra.mxu0 0.0
        %290 = vmatpush.msra.mxu0 0.0
        %291 = vmatpush.msra.mxu0 0.0
        %292 = vmatpush.msra.mxu0 0.0
        %293 = vmatpush.msra.mxu0 0.0
        %294 = vmatpush.msra.mxu0 0.0
        %295 = vmatpush.msra.mxu0 0.0
        %296 = vmatpush.msra.mxu0 0.0
        %297 = vmatpush.msra.mxu0 0.0
        %298 = vmatpush.msra.mxu0 0.0
        %299 = vmatpush.msra.mxu0 0.0
        %300 = vmatpush.msra.mxu0 %v255
        %301 = vmatpush.msra.mxu0 %v254
        %302 = vmatpush.msra.mxu0 %v253
        %303 = vmatpush.msra.mxu0 %v252
        %304 = vmatmul.f32.gmra.mxu0 %v266
        %v305 = vpop.f32.mrf.mxu0
        %v306 = vadd.f32 0.0, %v305
        %307 = vdwg.mxu0
        %308 = vmatpush.msra.mxu0 0.0
        %309 = vmatpush.msra.mxu0 0.0
        %310 = vmatpush.msra.mxu0 0.0
        %311 = vmatpush.msra.mxu0 0.0
        %312 = vmatpush.msra.mxu0 0.0
        %313 = vmatpush.msra.mxu0 0.0
        %314 = vmatpush.msra.mxu0 0.0
        %315 = vmatpush.msra.mxu0 0.0
        %316 = vmatpush.msra.mxu0 0.0
        %317 = vmatpush.msra.mxu0 0.0
        %318 = vmatpush.msra.mxu0 0.0
        %319 = vmatpush.msra.mxu0 0.0
        %320 = vmatpush.msra.mxu0 %v259
        %321 = vmatpush.msra.mxu0 %v258
        %322 = vmatpush.msra.mxu0 %v257
        %323 = vmatpush.msra.mxu0 %v256
        %324 = vmatmul.f32.gmra.mxu0 %v266
        %v325 = vpop.f32.mrf.mxu0
        %v326 = vadd.f32 0.0, %v325
        %327 = vdwg.mxu0
        %328 = vmatpush.msra.mxu0 0.0
        %329 = vmatpush.msra.mxu0 0.0
        %330 = vmatpush.msra.mxu0 0.0
        %331 = vmatpush.msra.mxu0 0.0
        %332 = vmatpush.msra.mxu0 0.0
        %333 = vmatpush.msra.mxu0 0.0
        %334 = vmatpush.msra.mxu0 0.0
        %335 = vmatpush.msra.mxu0 0.0
        %336 = vmatpush.msra.mxu0 0.0
        %337 = vmatpush.msra.mxu0 0.0
        %338 = vmatpush.msra.mxu0 0.0
        %339 = vmatpush.msra.mxu0 0.0
        %340 = vmatpush.msra.mxu0 %v263
        %341 = vmatpush.msra.mxu0 %v262
        %342 = vmatpush.msra.mxu0 %v261
        %343 = vmatpush.msra.mxu0 %v260
        %344 = vmatmul.f32.gmra.mxu0 %v266
        %v345 = vpop.f32.mrf.mxu0
        %v346 = vadd.f32 0.0, %v345
        %347 = vdwg.mxu0
        %v348 = vld [vmem:[%s2] sm:$0xff]
        %v349 = vld [vmem:[%s2 + $0x8] sm:$0xff]
        %v350 = vld [vmem:[%s2 + $0x10] sm:$0xff]
        %v351 = vld [vmem:[%s2 + $0x18] sm:$0xff]
        %v352 = vld [vmem:[%s2 + $0x20] sm:$0xff]
        %v353 = vld [vmem:[%s2 + $0x28] sm:$0xff]
        %v354 = vld [vmem:[%s2 + $0x30] sm:$0xff]
        %v355 = vld [vmem:[%s2 + $0x38] sm:$0xff]
        %v356 = vld [vmem:[%s2 + $0x40] sm:$0xff]
        %v357 = vld [vmem:[%s2 + $0x48] sm:$0xff]
        %v358 = vld [vmem:[%s2 + $0x50] sm:$0xff]
        %v359 = vld [vmem:[%s2 + $0x58] sm:$0xff]
        %v360 = vld [vmem:[%s2 + $0x60] sm:$0xff]
        %v361 = vld [vmem:[%s2 + $0x68] sm:$0xff]
        %v362 = vld [vmem:[%s2 + $0x70] sm:$0xff]
        %v363 = vld [vmem:[%s2 + $0x78] sm:$0xff]
        %364 = vmatpush.msra.mxu0 0.0
        %365 = vmatpush.msra.mxu0 0.0
        %366 = vmatpush.msra.mxu0 0.0
        %367 = vmatpush.msra.mxu0 0.0
        %368 = vmatpush.msra.mxu0 0.0
        %369 = vmatpush.msra.mxu0 0.0
        %370 = vmatpush.msra.mxu0 0.0
        %371 = vmatpush.msra.mxu0 0.0
        %372 = vmatpush.msra.mxu0 0.0
        %373 = vmatpush.msra.mxu0 0.0
        %374 = vmatpush.msra.mxu0 0.0
        %375 = vmatpush.msra.mxu0 0.0
        %376 = vmatpush.msra.mxu0 %v351
        %377 = vmatpush.msra.mxu0 %v350
        %378 = vmatpush.msra.mxu0 %v349
        %379 = vmatpush.msra.mxu0 %v348
        %380 = vmatmul.f32.gmra.mxu0 %v266
        %v381 = vpop.f32.mrf.mxu0
        %v382 = vadd.f32 0.0, %v381
        %383 = vdwg.mxu0
        %384 = vmatpush.msra.mxu0 0.0
        %385 = vmatpush.msra.mxu0 0.0
        %386 = vmatpush.msra.mxu0 0.0
        %387 = vmatpush.msra.mxu0 0.0
        %388 = vmatpush.msra.mxu0 0.0
        %389 = vmatpush.msra.mxu0 0.0
        %390 = vmatpush.msra.mxu0 0.0
        %391 = vmatpush.msra.mxu0 0.0
        %392 = vmatpush.msra.mxu0 0.0
        %393 = vmatpush.msra.mxu0 0.0
        %394 = vmatpush.msra.mxu0 0.0
        %395 = vmatpush.msra.mxu0 0.0
        %396 = vmatpush.msra.mxu0 %v355
        %397 = vmatpush.msra.mxu0 %v354
        %398 = vmatpush.msra.mxu0 %v353
        %399 = vmatpush.msra.mxu0 %v352
        %400 = vmatmul.f32.gmra.mxu0 %v266
        %v401 = vpop.f32.mrf.mxu0
        %v402 = vadd.f32 0.0, %v401
        %403 = vdwg.mxu0
        %404 = vmatpush.msra.mxu0 0.0
        %405 = vmatpush.msra.mxu0 0.0
        %406 = vmatpush.msra.mxu0 0.0
        %407 = vmatpush.msra.mxu0 0.0
        %408 = vmatpush.msra.mxu0 0.0
        %409 = vmatpush.msra.mxu0 0.0
        %410 = vmatpush.msra.mxu0 0.0
        %411 = vmatpush.msra.mxu0 0.0
        %412 = vmatpush.msra.mxu0 0.0
        %413 = vmatpush.msra.mxu0 0.0
        %414 = vmatpush.msra.mxu0 0.0
        %415 = vmatpush.msra.mxu0 0.0
        %416 = vmatpush.msra.mxu0 %v359
        %417 = vmatpush.msra.mxu0 %v358
        %418 = vmatpush.msra.mxu0 %v357
        %419 = vmatpush.msra.mxu0 %v356
        %420 = vmatmul.f32.gmra.mxu0 %v266
        %v421 = vpop.f32.mrf.mxu0
        %v422 = vadd.f32 0.0, %v421
        %423 = vdwg.mxu0
        %424 = vmatpush.msra.mxu0 0.0
        %425 = vmatpush.msra.mxu0 0.0
        %426 = vmatpush.msra.mxu0 0.0
        %427 = vmatpush.msra.mxu0 0.0
        %428 = vmatpush.msra.mxu0 0.0
        %429 = vmatpush.msra.mxu0 0.0
        %430 = vmatpush.msra.mxu0 0.0
        %431 = vmatpush.msra.mxu0 0.0
        %432 = vmatpush.msra.mxu0 0.0
        %433 = vmatpush.msra.mxu0 0.0
        %434 = vmatpush.msra.mxu0 0.0
        %435 = vmatpush.msra.mxu0 0.0
        %436 = vmatpush.msra.mxu0 %v363
        %437 = vmatpush.msra.mxu0 %v362
        %438 = vmatpush.msra.mxu0 %v361
        %439 = vmatpush.msra.mxu0 %v360
        %440 = vmatmul.f32.gmra.mxu0 %v266
        %v441 = vpop.f32.mrf.mxu0
        %v442 = vadd.f32 0.0, %v441
        %443 = vdwg.mxu0
        %v444 = vld [vmem:[%s3] sm:$0xff]
        %v445 = vld [vmem:[%s3 + $0x8] sm:$0xff]
        %v446 = vld [vmem:[%s3 + $0x10] sm:$0xff]
        %v447 = vld [vmem:[%s3 + $0x18] sm:$0xff]
        %v448 = vld [vmem:[%s3 + $0x20] sm:$0xff]
        %v449 = vld [vmem:[%s3 + $0x28] sm:$0xff]
        %v450 = vld [vmem:[%s3 + $0x30] sm:$0xff]
        %v451 = vld [vmem:[%s3 + $0x38] sm:$0xff]
        %v452 = vld [vmem:[%s3 + $0x40] sm:$0xff]
        %v453 = vld [vmem:[%s3 + $0x48] sm:$0xff]
        %v454 = vld [vmem:[%s3 + $0x50] sm:$0xff]
        %v455 = vld [vmem:[%s3 + $0x58] sm:$0xff]
        %v456 = vld [vmem:[%s3 + $0x60] sm:$0xff]
        %v457 = vld [vmem:[%s3 + $0x68] sm:$0xff]
        %v458 = vld [vmem:[%s3 + $0x70] sm:$0xff]
        %v459 = vld [vmem:[%s3 + $0x78] sm:$0xff]
        %460 = vmatpush.msra.mxu0 0.0
        %461 = vmatpush.msra.mxu0 0.0
        %462 = vmatpush.msra.mxu0 0.0
        %463 = vmatpush.msra.mxu0 0.0
        %464 = vmatpush.msra.mxu0 0.0
        %465 = vmatpush.msra.mxu0 0.0
        %466 = vmatpush.msra.mxu0 0.0
        %467 = vmatpush.msra.mxu0 0.0
        %468 = vmatpush.msra.mxu0 0.0
        %469 = vmatpush.msra.mxu0 0.0
        %470 = vmatpush.msra.mxu0 0.0
        %471 = vmatpush.msra.mxu0 0.0
        %472 = vmatpush.msra.mxu0 %v447
        %473 = vmatpush.msra.mxu0 %v446
        %474 = vmatpush.msra.mxu0 %v445
        %475 = vmatpush.msra.mxu0 %v444
        %476 = vmatmul.f32.gmra.mxu0 %v266
        %v477 = vpop.f32.mrf.mxu0
        %v478 = vadd.f32 0.0, %v477
        %479 = vdwg.mxu0
        %480 = vmatpush.msra.mxu0 0.0
        %481 = vmatpush.msra.mxu0 0.0
        %482 = vmatpush.msra.mxu0 0.0
        %483 = vmatpush.msra.mxu0 0.0
        %484 = vmatpush.msra.mxu0 0.0
        %485 = vmatpush.msra.mxu0 0.0
        %486 = vmatpush.msra.mxu0 0.0
        %487 = vmatpush.msra.mxu0 0.0
        %488 = vmatpush.msra.mxu0 0.0
        %489 = vmatpush.msra.mxu0 0.0
        %490 = vmatpush.msra.mxu0 0.0
        %491 = vmatpush.msra.mxu0 0.0
        %492 = vmatpush.msra.mxu0 %v451
        %493 = vmatpush.msra.mxu0 %v450
        %494 = vmatpush.msra.mxu0 %v449
        %495 = vmatpush.msra.mxu0 %v448
        %496 = vmatmul.f32.gmra.mxu0 %v266
        %v497 = vpop.f32.mrf.mxu0
        %v498 = vadd.f32 0.0, %v497
        %499 = vdwg.mxu0
        %500 = vmatpush.msra.mxu0 0.0
        %501 = vmatpush.msra.mxu0 0.0
        %502 = vmatpush.msra.mxu0 0.0
        %503 = vmatpush.msra.mxu0 0.0
        %504 = vmatpush.msra.mxu0 0.0
        %505 = vmatpush.msra.mxu0 0.0
        %506 = vmatpush.msra.mxu0 0.0
        %507 = vmatpush.msra.mxu0 0.0
        %508 = vmatpush.msra.mxu0 0.0
        %509 = vmatpush.msra.mxu0 0.0
        %510 = vmatpush.msra.mxu0 0.0
        %511 = vmatpush.msra.mxu0 0.0
        %512 = vmatpush.msra.mxu0 %v455
        %513 = vmatpush.msra.mxu0 %v454
        %514 = vmatpush.msra.mxu0 %v453
        %515 = vmatpush.msra.mxu0 %v452
        %516 = vmatmul.f32.gmra.mxu0 %v266
        %v517 = vpop.f32.mrf.mxu0
        %v518 = vadd.f32 0.0, %v517
        %519 = vdwg.mxu0
        %520 = vmatpush.msra.mxu0 0.0
        %521 = vmatpush.msra.mxu0 0.0
        %522 = vmatpush.msra.mxu0 0.0
        %523 = vmatpush.msra.mxu0 0.0
        %524 = vmatpush.msra.mxu0 0.0
        %525 = vmatpush.msra.mxu0 0.0
        %526 = vmatpush.msra.mxu0 0.0
        %527 = vmatpush.msra.mxu0 0.0
        %528 = vmatpush.msra.mxu0 0.0
        %529 = vmatpush.msra.mxu0 0.0
        %530 = vmatpush.msra.mxu0 0.0
        %531 = vmatpush.msra.mxu0 0.0
        %532 = vmatpush.msra.mxu0 %v459
        %533 = vmatpush.msra.mxu0 %v458
        %534 = vmatpush.msra.mxu0 %v457
        %535 = vmatpush.msra.mxu0 %v456
        %536 = vmatmul.f32.gmra.mxu0 %v266
        %v537 = vpop.f32.mrf.mxu0
        %v538 = vadd.f32 0.0, %v537
        %539 = vdwg.mxu0
        %vm540 = vcmask 64512
        %v542 = vsel %vm540, %v286, 0
        %v545 = vsel %vm540, %v382, 0
        %547 = vmatpush.xpose.msra.mxu0 0.0
        %548 = vmatpush.xpose.msra.mxu0 0.0
        %549 = vmatpush.xpose.msra.mxu0 0.0
        %550 = vmatpush.xpose.msra.mxu0 0.0
        %551 = vmatpush.xpose.msra.mxu0 0.0
        %552 = vmatpush.xpose.msra.mxu0 0.0
        %553 = vmatpush.xpose.msra.mxu0 0.0
        %554 = vmatpush.xpose.msra.mxu0 0.0
        %555 = vmatpush.xpose.msra.mxu0 0.0
        %556 = vmatpush.xpose.msra.mxu0 0.0
        %557 = vmatpush.xpose.msra.mxu0 0.0
        %558 = vmatpush.xpose.msra.mxu0 0.0
        %559 = vmatpush.xpose.msra.mxu0 0.0
        %560 = vmatpush.xpose.msra.mxu0 0.0
        %561 = vmatpush.xpose.msra.mxu0 0.0
        %562 = vmatpush.xpose.msra.mxu0 %v545
        %563 = vmatmul.f32.gmra.mxu0 %v542
        %v564 = vpop.f32.mrf.mxu0
        %v565 = vadd.f32 0.0, %v564
        %566 = vdwg.mxu0
        %v568 = vsel %vm540, %v306, 0
        %v571 = vsel %vm540, %v402, 0
        %573 = vmatpush.xpose.msra.mxu0 0.0
        %574 = vmatpush.xpose.msra.mxu0 0.0
        %575 = vmatpush.xpose.msra.mxu0 0.0
        %576 = vmatpush.xpose.msra.mxu0 0.0
        %577 = vmatpush.xpose.msra.mxu0 0.0
        %578 = vmatpush.xpose.msra.mxu0 0.0
        %579 = vmatpush.xpose.msra.mxu0 0.0
        %580 = vmatpush.xpose.msra.mxu0 0.0
        %581 = vmatpush.xpose.msra.mxu0 0.0
        %582 = vmatpush.xpose.msra.mxu0 0.0
        %583 = vmatpush.xpose.msra.mxu0 0.0
        %584 = vmatpush.xpose.msra.mxu0 0.0
        %585 = vmatpush.xpose.msra.mxu0 0.0
        %586 = vmatpush.xpose.msra.mxu0 0.0
        %587 = vmatpush.xpose.msra.mxu0 0.0
        %588 = vmatpush.xpose.msra.mxu0 %v571
        %589 = vmatmul.f32.gmra.mxu0 %v568
        %v590 = vpop.f32.mrf.mxu0
        %v591 = vadd.f32 0.0, %v590
        %592 = vdwg.mxu0
        %v594 = vsel %vm540, %v326, 0
        %v597 = vsel %vm540, %v422, 0
        %599 = vmatpush.xpose.msra.mxu0 0.0
        %600 = vmatpush.xpose.msra.mxu0 0.0
        %601 = vmatpush.xpose.msra.mxu0 0.0
        %602 = vmatpush.xpose.msra.mxu0 0.0
        %603 = vmatpush.xpose.msra.mxu0 0.0
        %604 = vmatpush.xpose.msra.mxu0 0.0
        %605 = vmatpush.xpose.msra.mxu0 0.0
        %606 = vmatpush.xpose.msra.mxu0 0.0
        %607 = vmatpush.xpose.msra.mxu0 0.0
        %608 = vmatpush.xpose.msra.mxu0 0.0
        %609 = vmatpush.xpose.msra.mxu0 0.0
        %610 = vmatpush.xpose.msra.mxu0 0.0
        %611 = vmatpush.xpose.msra.mxu0 0.0
        %612 = vmatpush.xpose.msra.mxu0 0.0
        %613 = vmatpush.xpose.msra.mxu0 0.0
        %614 = vmatpush.xpose.msra.mxu0 %v597
        %615 = vmatmul.f32.gmra.mxu0 %v594
        %v616 = vpop.f32.mrf.mxu0
        %v617 = vadd.f32 0.0, %v616
        %618 = vdwg.mxu0
        %v620 = vsel %vm540, %v346, 0
        %v623 = vsel %vm540, %v442, 0
        %625 = vmatpush.xpose.msra.mxu0 0.0
        %626 = vmatpush.xpose.msra.mxu0 0.0
        %627 = vmatpush.xpose.msra.mxu0 0.0
        %628 = vmatpush.xpose.msra.mxu0 0.0
        %629 = vmatpush.xpose.msra.mxu0 0.0
        %630 = vmatpush.xpose.msra.mxu0 0.0
        %631 = vmatpush.xpose.msra.mxu0 0.0
        %632 = vmatpush.xpose.msra.mxu0 0.0
        %633 = vmatpush.xpose.msra.mxu0 0.0
        %634 = vmatpush.xpose.msra.mxu0 0.0
        %635 = vmatpush.xpose.msra.mxu0 0.0
        %636 = vmatpush.xpose.msra.mxu0 0.0
        %637 = vmatpush.xpose.msra.mxu0 0.0
        %638 = vmatpush.xpose.msra.mxu0 0.0
        %639 = vmatpush.xpose.msra.mxu0 0.0
        %640 = vmatpush.xpose.msra.mxu0 %v623
        %641 = vmatmul.f32.gmra.mxu0 %v620
        %v642 = vpop.f32.mrf.mxu0
        %v643 = vadd.f32 0.0, %v642
        %644 = vdwg.mxu0
        %v645 = vmul.f32 %v565, 0.17677669
        %v646 = vmul.f32 %v591, 0.17677669
        %v647 = vmul.f32 %v617, 0.17677669
        %v648 = vmul.f32 %v643, 0.17677669
        %v649 = vlaneseq
        %v650 = vshrl.u32 %v649, 7
        %v651 = vlaneseq
        %v652 = vand.u32 %v651, 127
        %vm653 = vcmp.ge.s32.totalorder %v650, %v652
        %v654 = vsel %vm653, 1, 0
        %vm655 = vcmp.eq.s32.totalorder %v654, 1
        %v656 = vsel %vm655, %v645, -inf
        %v657 = vsel %vm655, %v646, -inf
        %v658 = vsel %vm655, %v647, -inf
        %v659 = vsel %vm655, %v648, -inf
        %v660 = vsel %vm540, %v656, -inf
        %661 = vmax.xlane.f32.xlu0 %v660
        %v662 = vpop.xlane.xlu0 %661
        %v663 = vsel %vm540, %v657, -inf
        %664 = vmax.xlane.f32.xlu0 %v663
        %v665 = vpop.xlane.xlu0 %664
        %v666 = vsel %vm540, %v658, -inf
        %667 = vmax.xlane.f32.xlu0 %v666
        %v668 = vpop.xlane.xlu0 %667
        %v669 = vsel %vm540, %v659, -inf
        %670 = vmax.xlane.f32.xlu0 %v669
        %v671 = vpop.xlane.xlu0 %670
        %v672 = vsub.f32 %v656, %v662
        %v673 = vsub.f32 %v657, %v665
        %v674 = vsub.f32 %v658, %v668
        %v675 = vsub.f32 %v659, %v671
        %v676 = vmul.f32 %v672, 1.442695
        %v677 = vpow.pop %v676
        %v678 = vmul.f32 %v673, 1.442695
        %v679 = vpow.pop %v678
        %v680 = vmul.f32 %v674, 1.442695
        %v681 = vpow.pop %v680
        %v682 = vmul.f32 %v675, 1.442695
        %v683 = vpow.pop %v682
        %v684 = vsel %vm540, %v677, 0.0
        %685 = vadd.xlane.f32.xlu0 %v684
        %v686 = vpop.xlane.xlu0 %685
        %v687 = vsel %vm540, %v679, 0.0
        %688 = vadd.xlane.f32.xlu0 %v687
        %v689 = vpop.xlane.xlu0 %688
        %v690 = vsel %vm540, %v681, 0.0
        %691 = vadd.xlane.f32.xlu0 %v690
        %v692 = vpop.xlane.xlu0 %691
        %v693 = vsel %vm540, %v683, 0.0
        %694 = vadd.xlane.f32.xlu0 %v693
        %v695 = vpop.xlane.xlu0 %694
        %v696 = vrcp.pop %v686
        %v697 = vrcp.pop %v689
        %v698 = vrcp.pop %v692
        %v699 = vrcp.pop %v695
        %v700 = vmul.f32 %v677, %v696
        %v701 = vmul.f32 %v679, %v697
        %v702 = vmul.f32 %v681, %v698
        %v703 = vmul.f32 %v683, %v699
        %v705 = vsel %vm540, %v700, 0
        %707 = vmatpush.msra.mxu0 0.0
        %708 = vmatpush.msra.mxu0 0.0
        %709 = vmatpush.msra.mxu0 0.0
        %710 = vmatpush.msra.mxu0 0.0
        %711 = vmatpush.msra.mxu0 0.0
        %712 = vmatpush.msra.mxu0 0.0
        %713 = vmatpush.msra.mxu0 0.0
        %714 = vmatpush.msra.mxu0 0.0
        %715 = vmatpush.msra.mxu0 0.0
        %716 = vmatpush.msra.mxu0 0.0
        %717 = vmatpush.msra.mxu0 0.0
        %718 = vmatpush.msra.mxu0 0.0
        %719 = vmatpush.msra.mxu0 0.0
        %720 = vmatpush.msra.mxu0 0.0
        %721 = vmatpush.msra.mxu0 0.0
        %722 = vmatpush.msra.mxu0 %v478
        %723 = vmatmul.f32.gmra.mxu0 %v705
        %v724 = vpop.f32.mrf.mxu0
        %v725 = vadd.f32 0.0, %v724
        %726 = vdwg.mxu0
        %v728 = vsel %vm540, %v701, 0
        %730 = vmatpush.msra.mxu0 0.0
        %731 = vmatpush.msra.mxu0 0.0
        %732 = vmatpush.msra.mxu0 0.0
        %733 = vmatpush.msra.mxu0 0.0
        %734 = vmatpush.msra.mxu0 0.0
        %735 = vmatpush.msra.mxu0 0.0
        %736 = vmatpush.msra.mxu0 0.0
        %737 = vmatpush.msra.mxu0 0.0
        %738 = vmatpush.msra.mxu0 0.0
        %739 = vmatpush.msra.mxu0 0.0
        %740 = vmatpush.msra.mxu0 0.0
        %741 = vmatpush.msra.mxu0 0.0
        %742 = vmatpush.msra.mxu0 0.0
        %743 = vmatpush.msra.mxu0 0.0
        %744 = vmatpush.msra.mxu0 0.0
        %745 = vmatpush.msra.mxu0 %v498
        %746 = vmatmul.f32.gmra.mxu0 %v728
        %v747 = vpop.f32.mrf.mxu0
        %v748 = vadd.f32 0.0, %v747
        %749 = vdwg.mxu0
        %v751 = vsel %vm540, %v702, 0
        %753 = vmatpush.msra.mxu0 0.0
        %754 = vmatpush.msra.mxu0 0.0
        %755 = vmatpush.msra.mxu0 0.0
        %756 = vmatpush.msra.mxu0 0.0
        %757 = vmatpush.msra.mxu0 0.0
        %758 = vmatpush.msra.mxu0 0.0
        %759 = vmatpush.msra.mxu0 0.0
        %760 = vmatpush.msra.mxu0 0.0
        %761 = vmatpush.msra.mxu0 0.0
        %762 = vmatpush.msra.mxu0 0.0
        %763 = vmatpush.msra.mxu0 0.0
        %764 = vmatpush.msra.mxu0 0.0
        %765 = vmatpush.msra.mxu0 0.0
        %766 = vmatpush.msra.mxu0 0.0
        %767 = vmatpush.msra.mxu0 0.0
        %768 = vmatpush.msra.mxu0 %v518
        %769 = vmatmul.f32.gmra.mxu0 %v751
        %v770 = vpop.f32.mrf.mxu0
        %v771 = vadd.f32 0.0, %v770
        %772 = vdwg.mxu0
        %v774 = vsel %vm540, %v703, 0
        %776 = vmatpush.msra.mxu0 0.0
        %777 = vmatpush.msra.mxu0 0.0
        %778 = vmatpush.msra.mxu0 0.0
        %779 = vmatpush.msra.mxu0 0.0
        %780 = vmatpush.msra.mxu0 0.0
        %781 = vmatpush.msra.mxu0 0.0
        %782 = vmatpush.msra.mxu0 0.0
        %783 = vmatpush.msra.mxu0 0.0
        %784 = vmatpush.msra.mxu0 0.0
        %785 = vmatpush.msra.mxu0 0.0
        %786 = vmatpush.msra.mxu0 0.0
        %787 = vmatpush.msra.mxu0 0.0
        %788 = vmatpush.msra.mxu0 0.0
        %789 = vmatpush.msra.mxu0 0.0
        %790 = vmatpush.msra.mxu0 0.0
        %791 = vmatpush.msra.mxu0 %v538
        %792 = vmatmul.f32.gmra.mxu0 %v774
        %v793 = vpop.f32.mrf.mxu0
        %v794 = vadd.f32 0.0, %v793
        %795 = vdwg.mxu0
        %v796 = vld [vmem:[%s4] sm:$0xff]
        %v797 = vld [vmem:[%s4 + $0x8] sm:$0xff]
        %v798 = vld [vmem:[%s4 + $0x10] sm:$0xff]
        %v799 = vld [vmem:[%s4 + $0x18] sm:$0xff]
        %v801 = vsel %vm540, %v725, 0
        %803 = vmatpush.msra.mxu0 0.0
        %804 = vmatpush.msra.mxu0 0.0
        %805 = vmatpush.msra.mxu0 0.0
        %806 = vmatpush.msra.mxu0 0.0
        %807 = vmatpush.msra.mxu0 0.0
        %808 = vmatpush.msra.mxu0 0.0
        %809 = vmatpush.msra.mxu0 0.0
        %810 = vmatpush.msra.mxu0 0.0
        %811 = vmatpush.msra.mxu0 0.0
        %812 = vmatpush.msra.mxu0 0.0
        %813 = vmatpush.msra.mxu0 0.0
        %814 = vmatpush.msra.mxu0 0.0
        %815 = vmatpush.msra.mxu0 0.0
        %816 = vmatpush.msra.mxu0 0.0
        %817 = vmatpush.msra.mxu0 0.0
        %818 = vmatpush.msra.mxu0 %v796
        %819 = vmatmul.f32.gmra.mxu0 %v801
        %v820 = vpop.f32.mrf.mxu0
        %v821 = vadd.f32 0.0, %v820
        %822 = vdwg.mxu0
        %v824 = vsel %vm540, %v748, 0
        %826 = vmatpush.msra.mxu0 0.0
        %827 = vmatpush.msra.mxu0 0.0
        %828 = vmatpush.msra.mxu0 0.0
        %829 = vmatpush.msra.mxu0 0.0
        %830 = vmatpush.msra.mxu0 0.0
        %831 = vmatpush.msra.mxu0 0.0
        %832 = vmatpush.msra.mxu0 0.0
        %833 = vmatpush.msra.mxu0 0.0
        %834 = vmatpush.msra.mxu0 0.0
        %835 = vmatpush.msra.mxu0 0.0
        %836 = vmatpush.msra.mxu0 0.0
        %837 = vmatpush.msra.mxu0 0.0
        %838 = vmatpush.msra.mxu0 0.0
        %839 = vmatpush.msra.mxu0 0.0
        %840 = vmatpush.msra.mxu0 0.0
        %841 = vmatpush.msra.mxu0 %v797
        %842 = vmatmul.f32.gmra.mxu0 %v824
        %v843 = vpop.f32.mrf.mxu0
        %v844 = vadd.f32 0.0, %v843
        %845 = vdwg.mxu0
        %v847 = vsel %vm540, %v771, 0
        %849 = vmatpush.msra.mxu0 0.0
        %850 = vmatpush.msra.mxu0 0.0
        %851 = vmatpush.msra.mxu0 0.0
        %852 = vmatpush.msra.mxu0 0.0
        %853 = vmatpush.msra.mxu0 0.0
        %854 = vmatpush.msra.mxu0 0.0
        %855 = vmatpush.msra.mxu0 0.0
        %856 = vmatpush.msra.mxu0 0.0
        %857 = vmatpush.msra.mxu0 0.0
        %858 = vmatpush.msra.mxu0 0.0
        %859 = vmatpush.msra.mxu0 0.0
        %860 = vmatpush.msra.mxu0 0.0
        %861 = vmatpush.msra.mxu0 0.0
        %862 = vmatpush.msra.mxu0 0.0
        %863 = vmatpush.msra.mxu0 0.0
        %864 = vmatpush.msra.mxu0 %v798
        %865 = vmatmul.f32.gmra.mxu0 %v847
        %v866 = vpop.f32.mrf.mxu0
        %v867 = vadd.f32 0.0, %v866
        %868 = vdwg.mxu0
        %v870 = vsel %vm540, %v794, 0
        %872 = vmatpush.msra.mxu0 0.0
        %873 = vmatpush.msra.mxu0 0.0
        %874 = vmatpush.msra.mxu0 0.0
        %875 = vmatpush.msra.mxu0 0.0
        %876 = vmatpush.msra.mxu0 0.0
        %877 = vmatpush.msra.mxu0 0.0
        %878 = vmatpush.msra.mxu0 0.0
        %879 = vmatpush.msra.mxu0 0.0
        %880 = vmatpush.msra.mxu0 0.0
        %881 = vmatpush.msra.mxu0 0.0
        %882 = vmatpush.msra.mxu0 0.0
        %883 = vmatpush.msra.mxu0 0.0
        %884 = vmatpush.msra.mxu0 0.0
        %885 = vmatpush.msra.mxu0 0.0
        %886 = vmatpush.msra.mxu0 0.0
        %887 = vmatpush.msra.mxu0 %v799
        %888 = vmatmul.f32.gmra.mxu0 %v870
        %v889 = vpop.f32.mrf.mxu0
        %v890 = vadd.f32 0.0, %v889
        %891 = vdwg.mxu0
        %v892 = vsel %vm264, %v821, 0.0
        %v893 = vsel %vm264, %v844, 0.0
        %v894 = vadd.f32 %v892, %v893
        %v895 = vsel %vm264, %v867, 0.0
        %v896 = vadd.f32 %v894, %v895
        %v897 = vsel %vm264, %v890, 0.0
        %v898 = vadd.f32 %v896, %v897
        %v899 = vld [vmem:[%s5] sm:$0x1]
        %v901 = vperm.slane %v899, 0
        %v903 = vadd.f32 %v898, %v901
        %904 = vst.msk [vmem:[%s242] sm:$0xff] %vm264, %v903
        %s905 = sand.u32 %s159, 1
        %s906 = scalar_lea.sflag [#allocation3], %s905
        %s907 = sand.u32 %s159, 1
        %s908 = smul.addr %s907, 8
        %s909 = scalar_lea.vmem [#allocation2], %s908
        // Predicated region
        $region45: #{tpu_custom_call.1} parent=43 // pred_check
          %p910 = pneg %p169
        $region46: #{tpu_custom_call.1} parent=43 // pred_check_branch
          %912 = sbr.rel (%p910) target = $region48
        $region47: #{tpu_custom_call.1} parent=43 // pred_region
          %914 = vsyncadd %s906, 0
          %s915 = smul.addr %s20, 8
          %s916 = scalar_lea.hbm %s6, %s915
          %s918 = sshll.u32 %s909, 4
          %s919 = int_to_ptr.vmem [resolvable:$true] %s918
          %s920 = sshll.u32 %s916, 4
          %s921 = int_to_ptr.hbm [resolvable:$true] %s920
          %923 = dma.vmem_to_hbm [thread:$0]  %s919, 128, %s921, %s906
        $region48: #{tpu_custom_call.1} parent=43 // pred_fallthru
          _
      $region44: #{tpu_custom_call.1} parent=5 // pred_fallthru
        _
      %p924 = scmp.le.s32.totalorder 2, %s15
      // Predicated region
      $region49: #{tpu_custom_call.1} parent=5 // pred_check
        %p925 = pneg %p924
      $region50: #{tpu_custom_call.1} parent=5 // pred_check_branch
        %927 = sbr.rel (%p925) target = $region52
      $region51: #{tpu_custom_call.1} parent=5 // pred_region
        %s928 = ssub.s32 %s15, 2
        // Predicated region
        $region53: #{tpu_custom_call.1} parent=51 // pred_check
          %p929 = pneg %p175
        $region54: #{tpu_custom_call.1} parent=51 // pred_check_branch
          %931 = sbr.rel (%p929) target = $region56
        $region55: #{tpu_custom_call.1} parent=51 // pred_region
          %s932 = sand.u32 %s160, 1
          %s933 = scalar_lea.sflag [#allocation3], %s932
          %s934 = sand.u32 %s160, 1
          %s935 = smul.addr %s934, 8
          %s936 = scalar_lea.vmem [#allocation2], %s935
          %938 = dma.done %s933, 128
        $region56: #{tpu_custom_call.1} parent=51 // pred_fallthru
          _
      $region52: #{tpu_custom_call.1} parent=5 // pred_fallthru
        _
    $region6: #{tpu_custom_call.1} parent=1 // loop_footer
      %s19 = sadd.s32 1, %s15
    $region7: #{tpu_custom_call.1} parent=1 // loop_footer_branch
      %14 = sbr.rel target = $region3
    $region8: #{tpu_custom_call.1} parent=1 // loop_exit
      _
    %939 = vsyncpa [#allocation3], 1
    %s940 = scalar_lea.sflag [#allocation3], 1
    %941 = vsyncpa %s940, 1

</llo_original>
